<compile_context>
chip_gen: v6e
topology: v6e:2x2x1
jax: 0.10.0
libtpu: 0.0.40
codegen_flags: <defaults>
</compile_context>

<pallas_src>
import functools

import numpy as np
import jax
import jax.numpy as jnp
from jax import lax
from jax.experimental import pallas as pl
from jax.experimental.pallas import tpu as pltpu


# ----------------------------------------------------------------------------
# Fused decoder kernel (one grid step == one batch element)
# ----------------------------------------------------------------------------

def _decoder_kernel(*refs, depth, K, pad, layer_dims):
    """Fused decoder forward for ONE batch element.

    refs = [x, skip_0..skip_{depth-2}, U_0..U_{depth-2},
            W_0..W_{depth-1}, b_0..b_{depth-1}, out]
      x      : (Cin0, L0)         lane-dense activation tile (batch squeezed)
      skip_i : (Cout_i, Lout_i)   skip used by decoder layer i
      U_i    : (Lin_i, Lout_i)    constant 0/1 nearest-x2 upsample matrix
      W_i    : (K*Cout_i, Cin_i)  folded conv weight (all taps stacked)
      b_i    : (Cout_i, 1)        bias
      out    : (Cout_last, Lout_last)
    """
    n_up = depth - 1
    i = 0
    x_ref = refs[i]; i += 1
    skip_refs = refs[i:i + n_up]; i += n_up
    u_refs = refs[i:i + n_up]; i += n_up
    w_refs = refs[i:i + depth]; i += depth
    b_refs = refs[i:i + depth]; i += depth
    o_ref = refs[i]

    x = x_ref[...].astype(jnp.float32)                       # (Cin0, L0)

    for li in range(depth):
        cin, cout, l_in, l_out = layer_dims[li]
        upsample = li < depth - 1

        if upsample:
            # Nearest-x2 upsample: one tiny 0/1 matmul shared across batch
            # and taps (block-diagonal structure over batch is exploited by
            # the batch grid axis).
            # TODO(synk): swap for a true lane interleave at large L.
            x = jnp.dot(x, u_refs[li][...],
                        preferred_element_type=jnp.float32)  # (cin, l_out)

        # One MXU matmul contracts over Cin for all K taps at once.
        y = jnp.dot(w_refs[li][...], x,
                    preferred_element_type=jnp.float32)      # (K*cout, l_out)

        # Conv tap shifts: zero-pad the lane axis once, then K static lane
        # slices (no gather matmuls, O(L) instead of O(L^2)).
        if pad > 0:
            zeros = jnp.zeros((K * cout, pad), jnp.float32)
            ypad = jnp.concatenate([zeros, y, zeros], axis=1)
        else:
            ypad = y

        acc = ypad[0:cout, 0:l_out]
        for k in range(1, K):
            acc = acc + ypad[k * cout:(k + 1) * cout, k:k + l_out]
        acc = acc + b_refs[li][...]                          # bias broadcast

        if upsample:
            acc = jnp.maximum(acc, 0.0)                      # ReLU
            acc = acc + skip_refs[li][...].astype(jnp.float32)
            # TODO(synk): nn.Dropout applied as identity (eval-mode semantics).
        x = acc

    # Single lane-dense writeback for this batch element.
    o_ref[...] = x.astype(o_ref.dtype)


# ----------------------------------------------------------------------------
# One-time parameter packing (kernel-friendly layouts + constant upsamplers)
# ----------------------------------------------------------------------------

def _upsample_matrix(l_in):
    """(l_in, 2*l_in) 0/1 matrix with u[:, j] = x[:, j//2] when applied as x @ U."""
    u = np.zeros((l_in, 2 * l_in), np.float32)
    cols = np.arange(2 * l_in)
    u[cols // 2, cols] = 1.0
    return jnp.asarray(u)


def pack_decoder_params(params, *, length, kernel_size):
    """Hoisted prep (done once): fold weights to (K*Cout, Cin), biases to
    (Cout, 1), and build per-layer nearest-x2 upsample matrices."""
    # TODO(synk): stride is assumed to be 1 (as in the reference config).
    depth = len(params)
    pad = (kernel_size - 1) // 2
    packed = dict(depth=depth, K=kernel_size, pad=pad, w=[], b=[], u=[], dims=[])
    L = length
    for li, layer in enumerate(params):
        cout, cin, K = layer['w'].shape
        upsample = li < depth - 1
        l_out = 2 * L if upsample else L
        # (Cout, Cin, K) -> (K, Cout, Cin) -> (K*Cout, Cin)
        w_fold = jnp.transpose(layer['w'], (2, 0, 1)).reshape(K * cout, cin)
        packed['w'].append(jnp.asarray(w_fold, jnp.float32))
        packed['b'].append(jnp.asarray(layer['b'], jnp.float32).reshape(cout, 1))
        if upsample:
            packed['u'].append(_upsample_matrix(L))
        packed['dims'].append((cin, cout, L, l_out))
        L = l_out
    packed['dims'] = tuple(packed['dims'])
    return packed


def decoder_forward(packed, x_ncl, skips_ncl):
    """x_ncl: (B, Cin, L) NCL like PyTorch; skips_ncl: list of NCL tensors.
    Returns (B, vocab, L_out) NCL. Single fused pallas_call, batch grid axis."""
    depth, K, pad = packed['depth'], packed['K'], packed['pad']
    dims = packed['dims']
    B = x_ncl.shape[0]
    cout_last, l_last = dims[-1][1], dims[-1][3]
    skips_used = [skips_ncl[-(i + 1)] for i in range(depth - 1)]

    kernel = functools.partial(_decoder_kernel, depth=depth, K=K, pad=pad,
                               layer_dims=dims)

    def per_batch(shape):
        nd = len(shape)
        return pl.BlockSpec((None,) + tuple(shape[1:]),
                            lambda b: (b,) + (0,) * (nd - 1))

    def resident(shape):
        nd = len(shape)
        return pl.BlockSpec(tuple(shape), lambda b: (0,) * nd)

    in_specs = ([per_batch(x_ncl.shape)]
                + [per_batch(s.shape) for s in skips_used]
                + [resident(u.shape) for u in packed['u']]
                + [resident(w.shape) for w in packed['w']]
                + [resident(bb.shape) for bb in packed['b']])
    out_spec = per_batch((B, cout_last, l_last))

    # Advisory cost estimate for XLA's scheduler.
    flops = 0
    for li, (cin, cout, l_in, l_out) in enumerate(dims):
        flops += 2 * K * cout * cin * l_out * B
        if li < depth - 1:
            flops += 2 * cin * l_in * l_out * B
    bytes_accessed = 4 * (x_ncl.size + sum(s.size for s in skips_used)
                          + sum(u.size for u in packed['u'])
                          + sum(w.size for w in packed['w'])
                          + sum(bb.size for bb in packed['b'])
                          + B * cout_last * l_last)

    return pl.pallas_call(
        kernel,
        grid=(B,),
        out_shape=jax.ShapeDtypeStruct((B, cout_last, l_last), x_ncl.dtype),
        in_specs=in_specs,
        out_specs=out_spec,
        compiler_params=pltpu.CompilerParams(
            dimension_semantics=("parallel",),
            vmem_limit_bytes=32 * 1024 * 1024),  # well under v7x's 64 MiB VMEM
        cost_estimate=pl.CostEstimate(flops=int(flops), transcendentals=0,
                                      bytes_accessed=int(bytes_accessed)),
    )(x_ncl, *skips_used, *packed['u'], *packed['w'], *packed['b'])


# ----------------------------------------------------------------------------
# Parameter init + pure-JAX reference (for verification)
# ----------------------------------------------------------------------------

def init_decoder_params(key, *, nchannels, depth, kernel_size, vocab_size):
    layers = []
    current = nchannels * 2 ** (depth - 1)
    for i in range(depth - 1, -1, -1):
        nxt = nchannels * 2 ** max(i - 1, 0) if i > 0 else vocab_size
        key, kw, kb = jax.random.split(key, 3)
        bound = 1.0 / float(current * kernel_size) ** 0.5
        w = jax.random.uniform(kw, (nxt, current, kernel_size),
                               jnp.float32, -bound, bound)
        b = jax.random.uniform(kb, (nxt,), jnp.float32, -bound, bound)
        layers.append({'w': w, 'b': b})
        current = nxt
    return layers


def decoder_reference(params, x_ncl, skips_ncl, *, kernel_size):
    pad = (kernel_size - 1) // 2

    def conv(x, w, b):
        out = lax.conv_general_dilated(
            x, w, window_strides=(1,), padding=[(pad, pad)],
            dimension_numbers=('NCW', 'OIW', 'NCW'))
        return out + b[None, :, None]

    x = x_ncl
    for i, layer in enumerate(params[:-1]):
        x = jnp.repeat(x, 2, axis=-1)
        x = jnp.maximum(conv(x, layer['w'], layer['b']), 0.0)
        x = x + skips_ncl[-(i + 1)]
    return conv(x, params[-1]['w'], params[-1]['b'])


if __name__ == "__main__":
    # Decoder(args): nchannels=4, depth=3, kernelSize=3, stride=1, vocabSize=8
    nchannels, depth, kernel_size, vocab_size = 4, 3, 3, 8
    B, L = 2, 8
    cin0 = nchannels * 2 ** (depth - 1)                                      # 16

    key = jax.random.PRNGKey(0)
    kp, kx, ks1, ks2 = jax.random.split(key, 4)

    params = init_decoder_params(kp, nchannels=nchannels, depth=depth,
                                 kernel_size=kernel_size, vocab_size=vocab_size)

    x = jax.random.normal(kx, (B, cin0, L), jnp.float32)                     # (2, 16, 8)
    # skip_connections[-1] feeds decoder layer 0: (B, 8, 16)
    # skip_connections[-2] feeds decoder layer 1: (B, 4, 32)
    skip_a = jax.random.normal(ks1, (B, nchannels, 4 * L), jnp.float32)      # (2, 4, 32)
    skip_b = jax.random.normal(ks2, (B, 2 * nchannels, 2 * L), jnp.float32)  # (2, 8, 16)
    skips = [skip_a, skip_b]

    packed = pack_decoder_params(params, length=L, kernel_size=kernel_size)
    out = decoder_forward(packed, x, skips)
    out = jax.block_until_ready(out)

    ref = decoder_reference(params, x, skips, kernel_size=kernel_size)
    assert out.shape == (B, vocab_size, 4 * L), out.shape
    max_err = float(jnp.max(jnp.abs(out - ref)))
    assert jnp.allclose(out, ref, atol=1e-4, rtol=1e-4), max_err

    print("KERNEL_OK")
</pallas_src>

<mosaic_0001>
module attributes {stable_mosaic.version = 11 : i64} {
  func.func @_decoder_kernel(%arg0: i32, %arg1: memref<1x16x8xf32, #tpu.memory_space<vmem>>, %arg2: memref<1x8x16xf32, #tpu.memory_space<vmem>>, %arg3: memref<1x4x32xf32, #tpu.memory_space<vmem>>, %arg4: memref<8x16xf32, #tpu.memory_space<vmem>>, %arg5: memref<16x32xf32, #tpu.memory_space<vmem>>, %arg6: memref<24x16xf32, #tpu.memory_space<vmem>>, %arg7: memref<12x8xf32, #tpu.memory_space<vmem>>, %arg8: memref<24x4xf32, #tpu.memory_space<vmem>>, %arg9: memref<8x1xf32, #tpu.memory_space<vmem>>, %arg10: memref<4x1xf32, #tpu.memory_space<vmem>>, %arg11: memref<8x1xf32, #tpu.memory_space<vmem>>, %arg12: memref<1x8x32xf32, #tpu.memory_space<vmem>>) attributes {dimension_semantics = [#tpu.dimension_semantics<parallel>], iteration_bounds = array<i64: 2>, scalar_prefetch = 0 : i64, scratch_operands = 0 : i64, tpu.core_type = #tpu.core_type<tc>, window_params = [{transform_indices = @transform_0, window_bounds = array<i64: 1, 16, 8>}, {transform_indices = @transform_1, window_bounds = array<i64: 1, 8, 16>}, {transform_indices = @transform_2, window_bounds = array<i64: 1, 4, 32>}, {pipeline_mode = #tpu.pipeline_mode<synchronous>, transform_indices = @transform_3, window_bounds = array<i64: 8, 16>}, {pipeline_mode = #tpu.pipeline_mode<synchronous>, transform_indices = @transform_4, window_bounds = array<i64: 16, 32>}, {pipeline_mode = #tpu.pipeline_mode<synchronous>, transform_indices = @transform_5, window_bounds = array<i64: 24, 16>}, {pipeline_mode = #tpu.pipeline_mode<synchronous>, transform_indices = @transform_6, window_bounds = array<i64: 12, 8>}, {pipeline_mode = #tpu.pipeline_mode<synchronous>, transform_indices = @transform_7, window_bounds = array<i64: 24, 4>}, {pipeline_mode = #tpu.pipeline_mode<synchronous>, transform_indices = @transform_8, window_bounds = array<i64: 8, 1>}, {pipeline_mode = #tpu.pipeline_mode<synchronous>, transform_indices = @transform_9, window_bounds = array<i64: 4, 1>}, {pipeline_mode = #tpu.pipeline_mode<synchronous>, transform_indices = @transform_10, window_bounds = array<i64: 8, 1>}, {transform_indices = @transform_11, window_bounds = array<i64: 1, 8, 32>}]} {
    %c0 = arith.constant 0 : index
    %c0_0 = arith.constant 0 : index
    %c0_1 = arith.constant 0 : index
    %0 = vector.load %arg1[%c0, %c0_0, %c0_1] : memref<1x16x8xf32, #tpu.memory_space<vmem>>, vector<1x16x8xf32>
    %1 = vector.shape_cast %0 : vector<1x16x8xf32> to vector<16x8xf32>
    %c0_2 = arith.constant 0 : index
    %c0_3 = arith.constant 0 : index
    %2 = vector.load %arg4[%c0_2, %c0_3] : memref<8x16xf32, #tpu.memory_space<vmem>>, vector<8x16xf32>
    %cst = arith.constant dense<0.000000e+00> : vector<16x16xf32>
    %3 = tpu.matmul %1, %2, %cst {dimension_numbers = #tpu.dot_dimension_numbers<[1], [0], [0], [1], [0, 0, 1, 1], [], []>} : vector<16x8xf32>, vector<8x16xf32>, vector<16x16xf32> -> vector<16x16xf32>
    %c0_4 = arith.constant 0 : index
    %c0_5 = arith.constant 0 : index
    %4 = vector.load %arg6[%c0_4, %c0_5] : memref<24x16xf32, #tpu.memory_space<vmem>>, vector<24x16xf32>
    %cst_6 = arith.constant dense<0.000000e+00> : vector<24x16xf32>
    %5 = tpu.matmul %4, %3, %cst_6 {dimension_numbers = #tpu.dot_dimension_numbers<[1], [0], [0], [1], [0, 0, 1, 1], [], []>} : vector<24x16xf32>, vector<16x16xf32>, vector<24x16xf32> -> vector<24x16xf32>
    %cst_7 = arith.constant 0.000000e+00 : f32
    %6 = vector.broadcast %cst_7 : f32 to vector<24x1xf32>
    %7 = tpu.concatenate %6, %5, %6 in 1 : vector<24x1xf32>, vector<24x16xf32>, vector<24x1xf32> -> vector<24x18xf32>
    %8 = vector.extract_strided_slice %7 {offsets = [0, 0], sizes = [8, 16], strides = [1, 1]} : vector<24x18xf32> to vector<8x16xf32>
    %9 = vector.extract_strided_slice %7 {offsets = [8, 1], sizes = [8, 16], strides = [1, 1]} : vector<24x18xf32> to vector<8x16xf32>
    %10 = arith.addf %8, %9 : vector<8x16xf32>
    %11 = vector.extract_strided_slice %7 {offsets = [16, 2], sizes = [8, 16], strides = [1, 1]} : vector<24x18xf32> to vector<8x16xf32>
    %12 = arith.addf %10, %11 : vector<8x16xf32>
    %c0_8 = arith.constant 0 : index
    %c0_9 = arith.constant 0 : index
    %13 = vector.load %arg9[%c0_8, %c0_9] : memref<8x1xf32, #tpu.memory_space<vmem>>, vector<8x1xf32>
    %14 = vector.broadcast %13 : vector<8x1xf32> to vector<8x16xf32>
    %15 = arith.addf %12, %14 : vector<8x16xf32>
    %cst_10 = arith.constant 0.000000e+00 : f32
    %16 = vector.broadcast %cst_10 : f32 to vector<8x16xf32>
    %17 = arith.maximumf %15, %16 : vector<8x16xf32>
    %c0_11 = arith.constant 0 : index
    %c0_12 = arith.constant 0 : index
    %c0_13 = arith.constant 0 : index
    %18 = vector.load %arg2[%c0_11, %c0_12, %c0_13] : memref<1x8x16xf32, #tpu.memory_space<vmem>>, vector<1x8x16xf32>
    %19 = vector.shape_cast %18 : vector<1x8x16xf32> to vector<8x16xf32>
    %20 = arith.addf %17, %19 : vector<8x16xf32>
    %c0_14 = arith.constant 0 : index
    %c0_15 = arith.constant 0 : index
    %21 = vector.load %arg5[%c0_14, %c0_15] : memref<16x32xf32, #tpu.memory_space<vmem>>, vector<16x32xf32>
    %cst_16 = arith.constant dense<0.000000e+00> : vector<8x32xf32>
    %22 = tpu.matmul %20, %21, %cst_16 {dimension_numbers = #tpu.dot_dimension_numbers<[1], [0], [0], [1], [0, 0, 1, 1], [], []>} : vector<8x16xf32>, vector<16x32xf32>, vector<8x32xf32> -> vector<8x32xf32>
    %c0_17 = arith.constant 0 : index
    %c0_18 = arith.constant 0 : index
    %23 = vector.load %arg7[%c0_17, %c0_18] : memref<12x8xf32, #tpu.memory_space<vmem>>, vector<12x8xf32>
    %cst_19 = arith.constant dense<0.000000e+00> : vector<12x32xf32>
    %24 = tpu.matmul %23, %22, %cst_19 {dimension_numbers = #tpu.dot_dimension_numbers<[1], [0], [0], [1], [0, 0, 1, 1], [], []>} : vector<12x8xf32>, vector<8x32xf32>, vector<12x32xf32> -> vector<12x32xf32>
    %cst_20 = arith.constant 0.000000e+00 : f32
    %25 = vector.broadcast %cst_20 : f32 to vector<12x1xf32>
    %26 = tpu.concatenate %25, %24, %25 in 1 : vector<12x1xf32>, vector<12x32xf32>, vector<12x1xf32> -> vector<12x34xf32>
    %27 = vector.extract_strided_slice %26 {offsets = [0, 0], sizes = [4, 32], strides = [1, 1]} : vector<12x34xf32> to vector<4x32xf32>
    %28 = vector.extract_strided_slice %26 {offsets = [4, 1], sizes = [4, 32], strides = [1, 1]} : vector<12x34xf32> to vector<4x32xf32>
    %29 = arith.addf %27, %28 : vector<4x32xf32>
    %30 = vector.extract_strided_slice %26 {offsets = [8, 2], sizes = [4, 32], strides = [1, 1]} : vector<12x34xf32> to vector<4x32xf32>
    %31 = arith.addf %29, %30 : vector<4x32xf32>
    %c0_21 = arith.constant 0 : index
    %c0_22 = arith.constant 0 : index
    %32 = vector.load %arg10[%c0_21, %c0_22] : memref<4x1xf32, #tpu.memory_space<vmem>>, vector<4x1xf32>
    %33 = vector.broadcast %32 : vector<4x1xf32> to vector<4x32xf32>
    %34 = arith.addf %31, %33 : vector<4x32xf32>
    %cst_23 = arith.constant 0.000000e+00 : f32
    %35 = vector.broadcast %cst_23 : f32 to vector<4x32xf32>
    %36 = arith.maximumf %34, %35 : vector<4x32xf32>
    %c0_24 = arith.constant 0 : index
    %c0_25 = arith.constant 0 : index
    %c0_26 = arith.constant 0 : index
    %37 = vector.load %arg3[%c0_24, %c0_25, %c0_26] : memref<1x4x32xf32, #tpu.memory_space<vmem>>, vector<1x4x32xf32>
    %38 = vector.shape_cast %37 : vector<1x4x32xf32> to vector<4x32xf32>
    %39 = arith.addf %36, %38 : vector<4x32xf32>
    %c0_27 = arith.constant 0 : index
    %c0_28 = arith.constant 0 : index
    %40 = vector.load %arg8[%c0_27, %c0_28] : memref<24x4xf32, #tpu.memory_space<vmem>>, vector<24x4xf32>
    %cst_29 = arith.constant dense<0.000000e+00> : vector<24x32xf32>
    %41 = tpu.matmul %40, %39, %cst_29 {dimension_numbers = #tpu.dot_dimension_numbers<[1], [0], [0], [1], [0, 0, 1, 1], [], []>} : vector<24x4xf32>, vector<4x32xf32>, vector<24x32xf32> -> vector<24x32xf32>
    %cst_30 = arith.constant 0.000000e+00 : f32
    %42 = vector.broadcast %cst_30 : f32 to vector<24x1xf32>
    %43 = tpu.concatenate %42, %41, %42 in 1 : vector<24x1xf32>, vector<24x32xf32>, vector<24x1xf32> -> vector<24x34xf32>
    %44 = vector.extract_strided_slice %43 {offsets = [0, 0], sizes = [8, 32], strides = [1, 1]} : vector<24x34xf32> to vector<8x32xf32>
    %45 = vector.extract_strided_slice %43 {offsets = [8, 1], sizes = [8, 32], strides = [1, 1]} : vector<24x34xf32> to vector<8x32xf32>
    %46 = arith.addf %44, %45 : vector<8x32xf32>
    %47 = vector.extract_strided_slice %43 {offsets = [16, 2], sizes = [8, 32], strides = [1, 1]} : vector<24x34xf32> to vector<8x32xf32>
    %48 = arith.addf %46, %47 : vector<8x32xf32>
    %c0_31 = arith.constant 0 : index
    %c0_32 = arith.constant 0 : index
    %49 = vector.load %arg11[%c0_31, %c0_32] : memref<8x1xf32, #tpu.memory_space<vmem>>, vector<8x1xf32>
    %50 = vector.broadcast %49 : vector<8x1xf32> to vector<8x32xf32>
    %51 = arith.addf %48, %50 : vector<8x32xf32>
    %c0_33 = arith.constant 0 : index
    %c0_34 = arith.constant 0 : index
    %c0_35 = arith.constant 0 : index
    %52 = vector.load %arg12[%c0_33, %c0_34, %c0_35] : memref<1x8x32xf32, #tpu.memory_space<vmem>>, vector<1x8x32xf32>
    %53 = vector.shape_cast %52 : vector<1x8x32xf32> to vector<8x32xf32>
    %54 = vector.shape_cast %51 : vector<8x32xf32> to vector<1x8x32xf32>
    tpu.vector_store %arg12[%c0_33, %c0_34, %c0_35], %54 {strides = array<i32>} : memref<1x8x32xf32, #tpu.memory_space<vmem>>, vector<1x8x32xf32>,
    return
  }
  func.func @transform_0(%arg0: i32) -> (i32, i32, i32) {
    %c0_i32 = arith.constant 0 : i32
    %c0_i32_0 = arith.constant 0 : i32
    %c0_i32_1 = arith.constant 0 : i32
    return %arg0, %c0_i32, %c0_i32_0 : i32, i32, i32
  }
  func.func @transform_1(%arg0: i32) -> (i32, i32, i32) {
    %c0_i32 = arith.constant 0 : i32
    %c0_i32_0 = arith.constant 0 : i32
    %c0_i32_1 = arith.constant 0 : i32
    return %arg0, %c0_i32, %c0_i32_0 : i32, i32, i32
  }
  func.func @transform_2(%arg0: i32) -> (i32, i32, i32) {
    %c0_i32 = arith.constant 0 : i32
    %c0_i32_0 = arith.constant 0 : i32
    %c0_i32_1 = arith.constant 0 : i32
    return %arg0, %c0_i32, %c0_i32_0 : i32, i32, i32
  }
  func.func @transform_3(%arg0: i32) -> (i32, i32) {
    %c0_i32 = arith.constant 0 : i32
    %c0_i32_0 = arith.constant 0 : i32
    %c0_i32_1 = arith.constant 0 : i32
    return %c0_i32, %c0_i32_0 : i32, i32
  }
  func.func @transform_4(%arg0: i32) -> (i32, i32) {
    %c0_i32 = arith.constant 0 : i32
    %c0_i32_0 = arith.constant 0 : i32
    %c0_i32_1 = arith.constant 0 : i32
    return %c0_i32, %c0_i32_0 : i32, i32
  }
  func.func @transform_5(%arg0: i32) -> (i32, i32) {
    %c0_i32 = arith.constant 0 : i32
    %c0_i32_0 = arith.constant 0 : i32
    %c0_i32_1 = arith.constant 0 : i32
    return %c0_i32, %c0_i32_0 : i32, i32
  }
  func.func @transform_6(%arg0: i32) -> (i32, i32) {
    %c0_i32 = arith.constant 0 : i32
    %c0_i32_0 = arith.constant 0 : i32
    %c0_i32_1 = arith.constant 0 : i32
    return %c0_i32, %c0_i32_0 : i32, i32
  }
  func.func @transform_7(%arg0: i32) -> (i32, i32) {
    %c0_i32 = arith.constant 0 : i32
    %c0_i32_0 = arith.constant 0 : i32
    %c0_i32_1 = arith.constant 0 : i32
    return %c0_i32, %c0_i32_0 : i32, i32
  }
  func.func @transform_8(%arg0: i32) -> (i32, i32) {
    %c0_i32 = arith.constant 0 : i32
    %c0_i32_0 = arith.constant 0 : i32
    %c0_i32_1 = arith.constant 0 : i32
    return %c0_i32, %c0_i32_0 : i32, i32
  }
  func.func @transform_9(%arg0: i32) -> (i32, i32) {
    %c0_i32 = arith.constant 0 : i32
    %c0_i32_0 = arith.constant 0 : i32
    %c0_i32_1 = arith.constant 0 : i32
    return %c0_i32, %c0_i32_0 : i32, i32
  }
  func.func @transform_10(%arg0: i32) -> (i32, i32) {
    %c0_i32 = arith.constant 0 : i32
    %c0_i32_0 = arith.constant 0 : i32
    %c0_i32_1 = arith.constant 0 : i32
    return %c0_i32, %c0_i32_0 : i32, i32
  }
  func.func @transform_11(%arg0: i32) -> (i32, i32, i32) {
    %c0_i32 = arith.constant 0 : i32
    %c0_i32_0 = arith.constant 0 : i32
    %c0_i32_1 = arith.constant 0 : i32
    return %arg0, %c0_i32, %c0_i32_0 : i32, i32, i32
  }
}

</mosaic_0001>

<llo_original>
// kernel: tpu_custom_call.1
$region0: #{tpu_custom_call.1}
  #allocation0 [shape = 'u32[]', space=smem, size = 0x4, offset = 0x4, fixed_abs, tag = 'smem constant byte address 0x4 - core index']
  #allocation1 [shape = 'u32[144,128]{1,0:T(1,128)}', space=vmem, size = 0x12000, scoped, tag = 'internal scratch']
  %s0 = inlined_call_operand.vmem [shape: f32[2,16,8], index: 0, kind: input, shape index: {}]
  %s1 = inlined_call_operand.vmem [shape: f32[2,8,16], index: 1, kind: input, shape index: {}]
  %s2 = inlined_call_operand.vmem [shape: f32[2,4,32], index: 2, kind: input, shape index: {}]
  %s3 = inlined_call_operand.vmem [shape: f32[8,16], index: 3, kind: input, shape index: {}]
  %s4 = inlined_call_operand.vmem [shape: f32[16,32], index: 4, kind: input, shape index: {}]
  %s5 = inlined_call_operand.vmem [shape: f32[24,16], index: 5, kind: input, shape index: {}]
  %s6 = inlined_call_operand.vmem [shape: f32[12,8], index: 6, kind: input, shape index: {}]
  %s7 = inlined_call_operand.vmem [shape: f32[24,4], index: 7, kind: input, shape index: {}]
  %s8 = inlined_call_operand.vmem [shape: f32[8,1], index: 8, kind: input, shape index: {}]
  %s9 = inlined_call_operand.vmem [shape: f32[4,1], index: 9, kind: input, shape index: {}]
  %s10 = inlined_call_operand.vmem [shape: f32[8,1], index: 10, kind: input, shape index: {}]
  %s11 = inlined_call_operand.hbm [shape: f32[2,8,32], index: 11, kind: output, shape index: {}]
  %s12 = sld [smem:[#allocation0]]
  $region77: #{tpu_custom_call.1} parent=0
    _
  %s14 = ssub.s32 1, %s12
  %s15 = scalar_select 0, %s14, %s12
  $region1: #{tpu_custom_call.1} parent=0
    #allocation2 [shape = 'u8[8192]{0}', space=vmem, size = 0x2000, scoped, tag = 'output window, operand 0']
    #allocation3 [shape = 's32[2]{0}', space=sflag, size = 0x8, scoped, tag = 'scoped memory for tpu_custom_call.1']
    %16 = vsyncpa [#allocation3], 0
    %s17 = scalar_lea.sflag [#allocation3], 1
    %18 = vsyncpa %s17, 0
    loop: start=0, step=1, limit=4
    $region2: #{tpu_custom_call.1} parent=1 // loop_pre_header
      _
    $region3: #{tpu_custom_call.1} parent=1 // loop_header
      %s20 = sphi 0, %s24
      %p21 = scmp.ge.s32.totalorder %s20, 4
      %s30 = sphi 0, %s32
      %s33 = sphi 0, %s30
      %s34 = sphi 0, %s33
      %s50 = sphi 0, %s34
      %s56 = sphi 0, %s58
      %s59 = sphi 0, %s56
      %s60 = sphi 0, %s59
      %s76 = sphi 0, %s60
      %s82 = sphi 0, %s84
      %s85 = sphi 0, %s82
      %s86 = sphi 0, %s85
      %s102 = sphi 0, %s86
      %s106 = sphi 0, %s106
      %s108 = sphi 0, %s106
      %s109 = sphi 0, %s108
      %s123 = sphi 0, %s109
      %s127 = sphi 0, %s127
      %s129 = sphi 0, %s127
      %s130 = sphi 0, %s129
      %s144 = sphi 0, %s130
      %s148 = sphi 0, %s148
      %s150 = sphi 0, %s148
      %s151 = sphi 0, %s150
      %s165 = sphi 0, %s151
      %s169 = sphi 0, %s169
      %s171 = sphi 0, %s169
      %s172 = sphi 0, %s171
      %s186 = sphi 0, %s172
      %s190 = sphi 0, %s190
      %s192 = sphi 0, %s190
      %s193 = sphi 0, %s192
      %s207 = sphi 0, %s193
      %s211 = sphi 0, %s211
      %s213 = sphi 0, %s211
      %s214 = sphi 0, %s213
      %s228 = sphi 0, %s214
      %s232 = sphi 0, %s232
      %s234 = sphi 0, %s232
      %s235 = sphi 0, %s234
      %s249 = sphi 0, %s235
      %s253 = sphi 0, %s253
      %s255 = sphi 0, %s253
      %s256 = sphi 0, %s255
      %s270 = sphi 0, %s256
      %s276 = sphi 0, %s278
      %s279 = sphi 0, %s276
      %s280 = sphi 0, %s279
      %s296 = sphi 0, %s280
    $region4: #{tpu_custom_call.1} parent=1 // loop_header_branch
      %23 = sbr.rel (%p21) target = $region8
    $region5: #{tpu_custom_call.1} parent=1 // loop_body
      %s25 = ssub.s32 %s20, 1
      %s26 = ssub.s32 %s20, 2
      %s27 = sadd.s32 %s20, 1
      %s28 = ssub.s32 %s20, %s27
      %p29 = scmp.eq.s32.totalorder %s28, 0
      %s31 = sadd.s32 %s30, 1
      %s32 = scalar_select %p29, %s30, %s31
      %p35 = pneg %p29
      %p36 = scmp.eq.s32.totalorder %s20, 1
      %p37 = por %p35, %p36
      %p38 = scmp.ne.s32.totalorder %s30, %s33
      %p39 = scmp.eq.s32.totalorder %s20, 0
      %p40 = por %p38, %p39
      %p41 = scmp.ne.s32.totalorder %s30, %s33
      %p42 = scmp.eq.s32.totalorder %s25, 1
      %p43 = por %p41, %p42
      %p44 = scmp.ne.s32.totalorder %s33, %s34
      %p45 = scmp.eq.s32.totalorder %s25, 0
      %p46 = por %p44, %p45
      %p47 = scmp.ne.s32.totalorder %s33, %s34
      %p48 = scmp.eq.s32.totalorder %s26, 1
      %p49 = por %p47, %p48
      %p51 = scmp.ne.s32.totalorder %s34, %s50
      %p52 = scmp.eq.s32.totalorder %s26, 0
      %p53 = por %p51, %p52
      %s54 = ssub.s32 %s20, %s27
      %p55 = scmp.eq.s32.totalorder %s54, 0
      %s57 = sadd.s32 %s56, 1
      %s58 = scalar_select %p55, %s56, %s57
      %p61 = pneg %p55
      %p62 = scmp.eq.s32.totalorder %s20, 1
      %p63 = por %p61, %p62
      %p64 = scmp.ne.s32.totalorder %s56, %s59
      %p65 = scmp.eq.s32.totalorder %s20, 0
      %p66 = por %p64, %p65
      %p67 = scmp.ne.s32.totalorder %s56, %s59
      %p68 = scmp.eq.s32.totalorder %s25, 1
      %p69 = por %p67, %p68
      %p70 = scmp.ne.s32.totalorder %s59, %s60
      %p71 = scmp.eq.s32.totalorder %s25, 0
      %p72 = por %p70, %p71
      %p73 = scmp.ne.s32.totalorder %s59, %s60
      %p74 = scmp.eq.s32.totalorder %s26, 1
      %p75 = por %p73, %p74
      %p77 = scmp.ne.s32.totalorder %s60, %s76
      %p78 = scmp.eq.s32.totalorder %s26, 0
      %p79 = por %p77, %p78
      %s80 = ssub.s32 %s20, %s27
      %p81 = scmp.eq.s32.totalorder %s80, 0
      %s83 = sadd.s32 %s82, 1
      %s84 = scalar_select %p81, %s82, %s83
      %p87 = pneg %p81
      %p88 = scmp.eq.s32.totalorder %s20, 1
      %p89 = por %p87, %p88
      %p90 = scmp.ne.s32.totalorder %s82, %s85
      %p91 = scmp.eq.s32.totalorder %s20, 0
      %p92 = por %p90, %p91
      %p93 = scmp.ne.s32.totalorder %s82, %s85
      %p94 = scmp.eq.s32.totalorder %s25, 1
      %p95 = por %p93, %p94
      %p96 = scmp.ne.s32.totalorder %s85, %s86
      %p97 = scmp.eq.s32.totalorder %s25, 0
      %p98 = por %p96, %p97
      %p99 = scmp.ne.s32.totalorder %s85, %s86
      %p100 = scmp.eq.s32.totalorder %s26, 1
      %p101 = por %p99, %p100
      %p103 = scmp.ne.s32.totalorder %s86, %s102
      %p104 = scmp.eq.s32.totalorder %s26, 0
      %p105 = por %p103, %p104
      %s107 = sadd.s32 %s106, 1
      %p110 = scmp.eq.s32.totalorder %s20, 1
      %p111 = scmp.ne.s32.totalorder %s106, %s108
      %p112 = scmp.eq.s32.totalorder %s20, 0
      %p113 = por %p111, %p112
      %p114 = scmp.ne.s32.totalorder %s106, %s108
      %p115 = scmp.eq.s32.totalorder %s25, 1
      %p116 = por %p114, %p115
      %p117 = scmp.ne.s32.totalorder %s108, %s109
      %p118 = scmp.eq.s32.totalorder %s25, 0
      %p119 = por %p117, %p118
      %p120 = scmp.ne.s32.totalorder %s108, %s109
      %p121 = scmp.eq.s32.totalorder %s26, 1
      %p122 = por %p120, %p121
      %p124 = scmp.ne.s32.totalorder %s109, %s123
      %p125 = scmp.eq.s32.totalorder %s26, 0
      %p126 = por %p124, %p125
      %s128 = sadd.s32 %s127, 1
      %p131 = scmp.eq.s32.totalorder %s20, 1
      %p132 = scmp.ne.s32.totalorder %s127, %s129
      %p133 = scmp.eq.s32.totalorder %s20, 0
      %p134 = por %p132, %p133
      %p135 = scmp.ne.s32.totalorder %s127, %s129
      %p136 = scmp.eq.s32.totalorder %s25, 1
      %p137 = por %p135, %p136
      %p138 = scmp.ne.s32.totalorder %s129, %s130
      %p139 = scmp.eq.s32.totalorder %s25, 0
      %p140 = por %p138, %p139
      %p141 = scmp.ne.s32.totalorder %s129, %s130
      %p142 = scmp.eq.s32.totalorder %s26, 1
      %p143 = por %p141, %p142
      %p145 = scmp.ne.s32.totalorder %s130, %s144
      %p146 = scmp.eq.s32.totalorder %s26, 0
      %p147 = por %p145, %p146
      %s149 = sadd.s32 %s148, 1
      %p152 = scmp.eq.s32.totalorder %s20, 1
      %p153 = scmp.ne.s32.totalorder %s148, %s150
      %p154 = scmp.eq.s32.totalorder %s20, 0
      %p155 = por %p153, %p154
      %p156 = scmp.ne.s32.totalorder %s148, %s150
      %p157 = scmp.eq.s32.totalorder %s25, 1
      %p158 = por %p156, %p157
      %p159 = scmp.ne.s32.totalorder %s150, %s151
      %p160 = scmp.eq.s32.totalorder %s25, 0
      %p161 = por %p159, %p160
      %p162 = scmp.ne.s32.totalorder %s150, %s151
      %p163 = scmp.eq.s32.totalorder %s26, 1
      %p164 = por %p162, %p163
      %p166 = scmp.ne.s32.totalorder %s151, %s165
      %p167 = scmp.eq.s32.totalorder %s26, 0
      %p168 = por %p166, %p167
      %s170 = sadd.s32 %s169, 1
      %p173 = scmp.eq.s32.totalorder %s20, 1
      %p174 = scmp.ne.s32.totalorder %s169, %s171
      %p175 = scmp.eq.s32.totalorder %s20, 0
      %p176 = por %p174, %p175
      %p177 = scmp.ne.s32.totalorder %s169, %s171
      %p178 = scmp.eq.s32.totalorder %s25, 1
      %p179 = por %p177, %p178
      %p180 = scmp.ne.s32.totalorder %s171, %s172
      %p181 = scmp.eq.s32.totalorder %s25, 0
      %p182 = por %p180, %p181
      %p183 = scmp.ne.s32.totalorder %s171, %s172
      %p184 = scmp.eq.s32.totalorder %s26, 1
      %p185 = por %p183, %p184
      %p187 = scmp.ne.s32.totalorder %s172, %s186
      %p188 = scmp.eq.s32.totalorder %s26, 0
      %p189 = por %p187, %p188
      %s191 = sadd.s32 %s190, 1
      %p194 = scmp.eq.s32.totalorder %s20, 1
      %p195 = scmp.ne.s32.totalorder %s190, %s192
      %p196 = scmp.eq.s32.totalorder %s20, 0
      %p197 = por %p195, %p196
      %p198 = scmp.ne.s32.totalorder %s190, %s192
      %p199 = scmp.eq.s32.totalorder %s25, 1
      %p200 = por %p198, %p199
      %p201 = scmp.ne.s32.totalorder %s192, %s193
      %p202 = scmp.eq.s32.totalorder %s25, 0
      %p203 = por %p201, %p202
      %p204 = scmp.ne.s32.totalorder %s192, %s193
      %p205 = scmp.eq.s32.totalorder %s26, 1
      %p206 = por %p204, %p205
      %p208 = scmp.ne.s32.totalorder %s193, %s207
      %p209 = scmp.eq.s32.totalorder %s26, 0
      %p210 = por %p208, %p209
      %s212 = sadd.s32 %s211, 1
      %p215 = scmp.eq.s32.totalorder %s20, 1
      %p216 = scmp.ne.s32.totalorder %s211, %s213
      %p217 = scmp.eq.s32.totalorder %s20, 0
      %p218 = por %p216, %p217
      %p219 = scmp.ne.s32.totalorder %s211, %s213
      %p220 = scmp.eq.s32.totalorder %s25, 1
      %p221 = por %p219, %p220
      %p222 = scmp.ne.s32.totalorder %s213, %s214
      %p223 = scmp.eq.s32.totalorder %s25, 0
      %p224 = por %p222, %p223
      %p225 = scmp.ne.s32.totalorder %s213, %s214
      %p226 = scmp.eq.s32.totalorder %s26, 1
      %p227 = por %p225, %p226
      %p229 = scmp.ne.s32.totalorder %s214, %s228
      %p230 = scmp.eq.s32.totalorder %s26, 0
      %p231 = por %p229, %p230
      %s233 = sadd.s32 %s232, 1
      %p236 = scmp.eq.s32.totalorder %s20, 1
      %p237 = scmp.ne.s32.totalorder %s232, %s234
      %p238 = scmp.eq.s32.totalorder %s20, 0
      %p239 = por %p237, %p238
      %p240 = scmp.ne.s32.totalorder %s232, %s234
      %p241 = scmp.eq.s32.totalorder %s25, 1
      %p242 = por %p240, %p241
      %p243 = scmp.ne.s32.totalorder %s234, %s235
      %p244 = scmp.eq.s32.totalorder %s25, 0
      %p245 = por %p243, %p244
      %p246 = scmp.ne.s32.totalorder %s234, %s235
      %p247 = scmp.eq.s32.totalorder %s26, 1
      %p248 = por %p246, %p247
      %p250 = scmp.ne.s32.totalorder %s235, %s249
      %p251 = scmp.eq.s32.totalorder %s26, 0
      %p252 = por %p250, %p251
      %s254 = sadd.s32 %s253, 1
      %p257 = scmp.eq.s32.totalorder %s20, 1
      %p258 = scmp.ne.s32.totalorder %s253, %s255
      %p259 = scmp.eq.s32.totalorder %s20, 0
      %p260 = por %p258, %p259
      %p261 = scmp.ne.s32.totalorder %s253, %s255
      %p262 = scmp.eq.s32.totalorder %s25, 1
      %p263 = por %p261, %p262
      %p264 = scmp.ne.s32.totalorder %s255, %s256
      %p265 = scmp.eq.s32.totalorder %s25, 0
      %p266 = por %p264, %p265
      %p267 = scmp.ne.s32.totalorder %s255, %s256
      %p268 = scmp.eq.s32.totalorder %s26, 1
      %p269 = por %p267, %p268
      %p271 = scmp.ne.s32.totalorder %s256, %s270
      %p272 = scmp.eq.s32.totalorder %s26, 0
      %p273 = por %p271, %p272
      %s274 = ssub.s32 %s20, %s27
      %p275 = scmp.eq.s32.totalorder %s274, 0
      %s277 = sadd.s32 %s276, 1
      %s278 = scalar_select %p275, %s276, %s277
      %p281 = pneg %p275
      %p282 = scmp.eq.s32.totalorder %s20, 1
      %p283 = por %p281, %p282
      %p284 = scmp.ne.s32.totalorder %s276, %s279
      %p285 = scmp.eq.s32.totalorder %s20, 0
      %p286 = por %p284, %p285
      %p287 = scmp.ne.s32.totalorder %s276, %s279
      %p288 = scmp.eq.s32.totalorder %s25, 1
      %p289 = por %p287, %p288
      %p290 = scmp.ne.s32.totalorder %s279, %s280
      %p291 = scmp.eq.s32.totalorder %s25, 0
      %p292 = por %p290, %p291
      %p293 = scmp.ne.s32.totalorder %s279, %s280
      %p294 = scmp.eq.s32.totalorder %s26, 1
      %p295 = por %p293, %p294
      %p297 = scmp.ne.s32.totalorder %s280, %s296
      %p298 = scmp.eq.s32.totalorder %s26, 0
      %p299 = por %p297, %p298
      %p300 = scmp.le.s32.totalorder 1, %s20
      %p301 = scmp.lt.s32.totalorder %s20, 3
      %p302 = pnand %p300, %p301
      %p303 = pneg %p302
      // Predicated region
      $region9: #{tpu_custom_call.1} parent=5 // pred_check
        _
      $region10: #{tpu_custom_call.1} parent=5 // pred_check_branch
        %305 = sbr.rel (%p302) target = $region12
      $region11: #{tpu_custom_call.1} parent=5 // pred_region
        %s306 = ssub.s32 %s20, 1
        // Predicated region
        $region13: #{tpu_custom_call.1} parent=11 // pred_check
          %p307 = pneg %p119
        $region14: #{tpu_custom_call.1} parent=11 // pred_check_branch
          %309 = sbr.rel (%p307) target = $region16
        $region15: #{tpu_custom_call.1} parent=11 // pred_region
          _
        $region16: #{tpu_custom_call.1} parent=11 // pred_fallthru
          _
        // Predicated region
        $region17: #{tpu_custom_call.1} parent=11 // pred_check
          %p310 = pneg %p140
        $region18: #{tpu_custom_call.1} parent=11 // pred_check_branch
          %312 = sbr.rel (%p310) target = $region20
        $region19: #{tpu_custom_call.1} parent=11 // pred_region
          _
        $region20: #{tpu_custom_call.1} parent=11 // pred_fallthru
          _
        // Predicated region
        $region21: #{tpu_custom_call.1} parent=11 // pred_check
          %p313 = pneg %p161
        $region22: #{tpu_custom_call.1} parent=11 // pred_check_branch
          %315 = sbr.rel (%p313) target = $region24
        $region23: #{tpu_custom_call.1} parent=11 // pred_region
          _
        $region24: #{tpu_custom_call.1} parent=11 // pred_fallthru
          _
        // Predicated region
        $region25: #{tpu_custom_call.1} parent=11 // pred_check
          %p316 = pneg %p182
        $region26: #{tpu_custom_call.1} parent=11 // pred_check_branch
          %318 = sbr.rel (%p316) target = $region28
        $region27: #{tpu_custom_call.1} parent=11 // pred_region
          _
        $region28: #{tpu_custom_call.1} parent=11 // pred_fallthru
          _
        // Predicated region
        $region29: #{tpu_custom_call.1} parent=11 // pred_check
          %p319 = pneg %p203
        $region30: #{tpu_custom_call.1} parent=11 // pred_check_branch
          %321 = sbr.rel (%p319) target = $region32
        $region31: #{tpu_custom_call.1} parent=11 // pred_region
          _
        $region32: #{tpu_custom_call.1} parent=11 // pred_fallthru
          _
        // Predicated region
        $region33: #{tpu_custom_call.1} parent=11 // pred_check
          %p322 = pneg %p224
        $region34: #{tpu_custom_call.1} parent=11 // pred_check_branch
          %324 = sbr.rel (%p322) target = $region36
        $region35: #{tpu_custom_call.1} parent=11 // pred_region
          _
        $region36: #{tpu_custom_call.1} parent=11 // pred_fallthru
          _
        // Predicated region
        $region37: #{tpu_custom_call.1} parent=11 // pred_check
          %p325 = pneg %p245
        $region38: #{tpu_custom_call.1} parent=11 // pred_check_branch
          %327 = sbr.rel (%p325) target = $region40
        $region39: #{tpu_custom_call.1} parent=11 // pred_region
          _
        $region40: #{tpu_custom_call.1} parent=11 // pred_fallthru
          _
        // Predicated region
        $region41: #{tpu_custom_call.1} parent=11 // pred_check
          %p328 = pneg %p266
        $region42: #{tpu_custom_call.1} parent=11 // pred_check_branch
          %330 = sbr.rel (%p328) target = $region44
        $region43: #{tpu_custom_call.1} parent=11 // pred_region
          _
        $region44: #{tpu_custom_call.1} parent=11 // pred_fallthru
          _
      $region12: #{tpu_custom_call.1} parent=5 // pred_fallthru
        _
      %p331 = scmp.lt.s32.totalorder %s20, 2
      // Predicated region
      $region45: #{tpu_custom_call.1} parent=5 // pred_check
        %p332 = pneg %p331
      $region46: #{tpu_custom_call.1} parent=5 // pred_check_branch
        %334 = sbr.rel (%p332) target = $region48
      $region47: #{tpu_custom_call.1} parent=5 // pred_region
        // Predicated region
        $region49: #{tpu_custom_call.1} parent=47 // pred_check
          %p335 = pneg %p40
        $region50: #{tpu_custom_call.1} parent=47 // pred_check_branch
          %337 = sbr.rel (%p335) target = $region52
        $region51: #{tpu_custom_call.1} parent=47 // pred_region
          %p338 = scmp.lt.s32.totalorder %s20, 1
          %s339 = scalar_select %p338, %s20, 1
          %s340 = smul.addr %s339, 2
          %s341 = smul.addr %s340, 8
          %s342 = scalar_lea.vmem %s0, %s341
        $region52: #{tpu_custom_call.1} parent=47 // pred_fallthru
          _
        // Predicated region
        $region53: #{tpu_custom_call.1} parent=47 // pred_check
          %p343 = pneg %p66
        $region54: #{tpu_custom_call.1} parent=47 // pred_check_branch
          %345 = sbr.rel (%p343) target = $region56
        $region55: #{tpu_custom_call.1} parent=47 // pred_region
          %p346 = scmp.lt.s32.totalorder %s20, 1
          %s347 = scalar_select %p346, %s20, 1
          %s348 = smul.addr %s347, 8
          %s349 = scalar_lea.vmem %s1, %s348
        $region56: #{tpu_custom_call.1} parent=47 // pred_fallthru
          _
        // Predicated region
        $region57: #{tpu_custom_call.1} parent=47 // pred_check
          %p350 = pneg %p92
        $region58: #{tpu_custom_call.1} parent=47 // pred_check_branch
          %352 = sbr.rel (%p350) target = $region60
        $region59: #{tpu_custom_call.1} parent=47 // pred_region
          %p353 = scmp.lt.s32.totalorder %s20, 1
          %s354 = scalar_select %p353, %s20, 1
          %s355 = smul.addr %s354, 4
          %s356 = scalar_lea.vmem %s2, %s355
        $region60: #{tpu_custom_call.1} parent=47 // pred_fallthru
          _
      $region48: #{tpu_custom_call.1} parent=5 // pred_fallthru
        _
      %p357 = scmp.le.s32.totalorder 1, %s20
      %p358 = scmp.lt.s32.totalorder %s20, 3
      %p359 = pnand %p357, %p358
      %p360 = pneg %p359
      // Predicated region
      $region61: #{tpu_custom_call.1} parent=5 // pred_check
        _
      $region62: #{tpu_custom_call.1} parent=5 // pred_check_branch
        %362 = sbr.rel (%p359) target = $region64
      $region63: #{tpu_custom_call.1} parent=5 // pred_region
        %s363 = ssub.s32 %s20, 1
        %p364 = scmp.lt.s32.totalorder %s25, 1
        %s365 = scalar_select %p364, %s25, 1
        %s366 = smul.addr %s365, 2
        %s367 = smul.addr %s366, 8
        %s368 = scalar_lea.vmem %s0, %s367
        %p369 = pneg %p46
        %p370 = pneg %p43
        %p371 = scmp.lt.s32.totalorder %s25, 1
        %s372 = scalar_select %p371, %s25, 1
        %s373 = smul.addr %s372, 8
        %s374 = scalar_lea.vmem %s1, %s373
        %p375 = pneg %p72
        %p376 = pneg %p69
        %p377 = scmp.lt.s32.totalorder %s25, 1
        %s378 = scalar_select %p377, %s25, 1
        %s379 = smul.addr %s378, 4
        %s380 = scalar_lea.vmem %s2, %s379
        %p381 = pneg %p98
        %p382 = pneg %p95
        %p383 = pneg %p119
        %p384 = pneg %p116
        %p385 = pneg %p140
        %p386 = pneg %p137
        %p387 = pneg %p161
        %p388 = pneg %p158
        %p389 = pneg %p182
        %p390 = pneg %p179
        %p391 = pneg %p203
        %p392 = pneg %p200
        %p393 = pneg %p224
        %p394 = pneg %p221
        %p395 = pneg %p245
        %p396 = pneg %p242
        %p397 = pneg %p266
        %p398 = pneg %p263
        %p399 = pneg %p292
        %p400 = pneg %p289
        %s401 = sand.u32 %s279, 1
        %s402 = scalar_lea.sflag [#allocation3], %s401
        %s403 = sand.u32 %s279, 1
        %s404 = smul.addr %s403, 8
        %s405 = scalar_lea.vmem [#allocation2], %s404
        %p406 = scmp.lt.s32.totalorder %s25, 1
        %s407 = scalar_select %p406, %s25, 1
        %s408 = smul.addr %s407, 2
        %s409 = smul.addr %s408, 8
        %s410 = scalar_lea.vmem %s0, %s409
        %p411 = scmp.lt.s32.totalorder %s25, 1
        %s412 = scalar_select %p411, %s25, 1
        %s413 = smul.addr %s412, 8
        %s414 = scalar_lea.vmem %s1, %s413
        %p415 = scmp.lt.s32.totalorder %s25, 1
        %s416 = scalar_select %p415, %s25, 1
        %s417 = smul.addr %s416, 4
        %s418 = scalar_lea.vmem %s2, %s417
        %v419 = vld [vmem:[%s410] sm:$0xff]
        %v420 = vld [vmem:[%s410 + $0x8] sm:$0xff]
        %v421 = vld [vmem:[%s3] sm:$0xff]
        %vm422 = vcmask 64512
        %v424 = vsel %vm422, %v419, 0
        %v427 = vsel %vm422, %v420, 0
        %429 = vmatprep.subr.mxu0 0.0
        %430 = vmatpush1.msra.mxu0 0.0
        %431 = vmatprep.subr.mxu0 0.0
        %432 = vmatpush1.msra.mxu0 0.0
        %433 = vmatprep.subr.mxu0 0.0
        %434 = vmatpush1.msra.mxu0 0.0
        %435 = vmatprep.subr.mxu0 0.0
        %436 = vmatpush1.msra.mxu0 0.0
        %437 = vmatprep.subr.mxu0 0.0
        %438 = vmatpush1.msra.mxu0 0.0
        %439 = vmatprep.subr.mxu0 0.0
        %440 = vmatpush1.msra.mxu0 0.0
        %441 = vmatprep.subr.mxu0 0.0
        %442 = vmatpush1.msra.mxu0 0.0
        %443 = vmatprep.subr.mxu0 0.0
        %444 = vmatpush1.msra.mxu0 0.0
        %445 = vmatprep.subr.mxu0 0.0
        %446 = vmatpush1.msra.mxu0 0.0
        %447 = vmatprep.subr.mxu0 0.0
        %448 = vmatpush1.msra.mxu0 0.0
        %449 = vmatprep.subr.mxu0 0.0
        %450 = vmatpush1.msra.mxu0 0.0
        %451 = vmatprep.subr.mxu0 0.0
        %452 = vmatpush1.msra.mxu0 0.0
        %453 = vmatprep.subr.mxu0 0.0
        %454 = vmatpush1.msra.mxu0 0.0
        %455 = vmatprep.subr.mxu0 0.0
        %456 = vmatpush1.msra.mxu0 0.0
        %457 = vmatprep.subr.mxu0 0.0
        %458 = vmatpush1.msra.mxu0 0.0
        %459 = vmatprep.subr.mxu0 0.0
        %460 = vmatpush1.msra.mxu0 %v421
        %461 = vmatprep.subr.mxu0 0.0
        %462 = vmatpush2.msra.mxu0 0.0
        %463 = vmatprep.subr.mxu0 0.0
        %464 = vmatpush2.msra.mxu0 0.0
        %465 = vmatprep.subr.mxu0 0.0
        %466 = vmatpush2.msra.mxu0 0.0
        %467 = vmatprep.subr.mxu0 0.0
        %468 = vmatpush2.msra.mxu0 0.0
        %469 = vmatprep.subr.mxu0 0.0
        %470 = vmatpush2.msra.mxu0 0.0
        %471 = vmatprep.subr.mxu0 0.0
        %472 = vmatpush2.msra.mxu0 0.0
        %473 = vmatprep.subr.mxu0 0.0
        %474 = vmatpush2.msra.mxu0 0.0
        %475 = vmatprep.subr.mxu0 0.0
        %476 = vmatpush2.msra.mxu0 0.0
        %477 = vmatprep.subr.mxu0 0.0
        %478 = vmatpush2.msra.mxu0 0.0
        %479 = vmatprep.subr.mxu0 0.0
        %480 = vmatpush2.msra.mxu0 0.0
        %481 = vmatprep.subr.mxu0 0.0
        %482 = vmatpush2.msra.mxu0 0.0
        %483 = vmatprep.subr.mxu0 0.0
        %484 = vmatpush2.msra.mxu0 0.0
        %485 = vmatprep.subr.mxu0 0.0
        %486 = vmatpush2.msra.mxu0 0.0
        %487 = vmatprep.subr.mxu0 0.0
        %488 = vmatpush2.msra.mxu0 0.0
        %489 = vmatprep.subr.mxu0 0.0
        %490 = vmatpush2.msra.mxu0 0.0
        %491 = vmatprep.subr.mxu0 0.0
        %492 = vmatpush2.msra.mxu0 0.0
        %493 = vmatprep.mubr.f32.mxu0 0.0
        %494 = vmatmul.mubr.f32.gmra.mxu0 %v424
        %v495 = vpop.f32.mrf.mxu0
        %v496 = vadd.f32 0.0, %v495
        %v497 = vpop.f32.mrf.mxu0
        %498 = vmatprep.mubr.f32.mxu0 0.0
        %499 = vmatmul.mubr.f32.gmra.mxu0 %v427
        %v500 = vpop.f32.mrf.mxu0
        %v501 = vadd.f32 0.0, %v500
        %v502 = vpop.f32.mrf.mxu0
        %503 = vdwg.mxu0
        %v504 = vld [vmem:[%s5] sm:$0xff]
        %v505 = vld [vmem:[%s5 + $0x8] sm:$0xff]
        %v506 = vld [vmem:[%s5 + $0x10] sm:$0xff]
        %vm507 = vcmask 130048
        %v509 = vsel %vm507, %v504, 0
        %v512 = vsel %vm507, %v505, 0
        %v515 = vsel %vm507, %v506, 0
        %517 = vmatprep.subr.mxu0 0.0
        %518 = vmatpush1.msra.mxu0 0.0
        %519 = vmatprep.subr.mxu0 0.0
        %520 = vmatpush1.msra.mxu0 0.0
        %521 = vmatprep.subr.mxu0 0.0
        %522 = vmatpush1.msra.mxu0 0.0
        %523 = vmatprep.subr.mxu0 0.0
        %524 = vmatpush1.msra.mxu0 0.0
        %525 = vmatprep.subr.mxu0 0.0
        %526 = vmatpush1.msra.mxu0 0.0
        %527 = vmatprep.subr.mxu0 0.0
        %528 = vmatpush1.msra.mxu0 0.0
        %529 = vmatprep.subr.mxu0 0.0
        %530 = vmatpush1.msra.mxu0 0.0
        %531 = vmatprep.subr.mxu0 0.0
        %532 = vmatpush1.msra.mxu0 0.0
        %533 = vmatprep.subr.mxu0 0.0
        %534 = vmatpush1.msra.mxu0 0.0
        %535 = vmatprep.subr.mxu0 0.0
        %536 = vmatpush1.msra.mxu0 0.0
        %537 = vmatprep.subr.mxu0 0.0
        %538 = vmatpush1.msra.mxu0 0.0
        %539 = vmatprep.subr.mxu0 0.0
        %540 = vmatpush1.msra.mxu0 0.0
        %541 = vmatprep.subr.mxu0 0.0
        %542 = vmatpush1.msra.mxu0 0.0
        %543 = vmatprep.subr.mxu0 0.0
        %544 = vmatpush1.msra.mxu0 0.0
        %545 = vmatprep.subr.mxu0 0.0
        %546 = vmatpush1.msra.mxu0 %v501
        %547 = vmatprep.subr.mxu0 0.0
        %548 = vmatpush1.msra.mxu0 %v496
        %549 = vmatprep.subr.mxu0 0.0
        %550 = vmatpush2.msra.mxu0 0.0
        %551 = vmatprep.subr.mxu0 0.0
        %552 = vmatpush2.msra.mxu0 0.0
        %553 = vmatprep.subr.mxu0 0.0
        %554 = vmatpush2.msra.mxu0 0.0
        %555 = vmatprep.subr.mxu0 0.0
        %556 = vmatpush2.msra.mxu0 0.0
        %557 = vmatprep.subr.mxu0 0.0
        %558 = vmatpush2.msra.mxu0 0.0
        %559 = vmatprep.subr.mxu0 0.0
        %560 = vmatpush2.msra.mxu0 0.0
        %561 = vmatprep.subr.mxu0 0.0
        %562 = vmatpush2.msra.mxu0 0.0
        %563 = vmatprep.subr.mxu0 0.0
        %564 = vmatpush2.msra.mxu0 0.0
        %565 = vmatprep.subr.mxu0 0.0
        %566 = vmatpush2.msra.mxu0 0.0
        %567 = vmatprep.subr.mxu0 0.0
        %568 = vmatpush2.msra.mxu0 0.0
        %569 = vmatprep.subr.mxu0 0.0
        %570 = vmatpush2.msra.mxu0 0.0
        %571 = vmatprep.subr.mxu0 0.0
        %572 = vmatpush2.msra.mxu0 0.0
        %573 = vmatprep.subr.mxu0 0.0
        %574 = vmatpush2.msra.mxu0 0.0
        %575 = vmatprep.subr.mxu0 0.0
        %576 = vmatpush2.msra.mxu0 0.0
        %577 = vmatprep.subr.mxu0 0.0
        %578 = vmatpush2.msra.mxu0 0.0
        %579 = vmatprep.subr.mxu0 0.0
        %580 = vmatpush2.msra.mxu0 0.0
        %581 = vmatprep.mubr.f32.mxu0 0.0
        %582 = vmatmul.mubr.f32.gmra.mxu0 %v509
        %v583 = vpop.f32.mrf.mxu0
        %v584 = vadd.f32 0.0, %v583
        %v585 = vpop.f32.mrf.mxu0
        %586 = vmatprep.mubr.f32.mxu0 0.0
        %587 = vmatmul.mubr.f32.gmra.mxu0 %v512
        %v588 = vpop.f32.mrf.mxu0
        %v589 = vadd.f32 0.0, %v588
        %v590 = vpop.f32.mrf.mxu0
        %591 = vmatprep.mubr.f32.mxu0 0.0
        %592 = vmatmul.mubr.f32.gmra.mxu0 %v515
        %v593 = vpop.f32.mrf.mxu0
        %v594 = vadd.f32 0.0, %v593
        %v595 = vpop.f32.mrf.mxu0
        %596 = vdwg.mxu0
        %600 = vrot.lane.b32.xlu0 %v584, 1
        %v601 = vpop.permute.xlu0 %600
        %602 = vrot.lane.b32.xlu0 %v589, 1
        %v603 = vpop.permute.xlu0 %602
        %604 = vrot.lane.b32.xlu0 %v594, 1
        %v605 = vpop.permute.xlu0 %604
        %vm609 = vcmask 7168
        %v610 = vsel %vm609, 0.0, %v601
        %v611 = vsel %vm609, 0.0, %v603
        %v612 = vsel %vm609, 0.0, %v605
        %vm613 = vcmask 138240
        %v614 = vsel %vm613, %v610, 0.0
        %v615 = vsel %vm613, %v611, 0.0
        %v616 = vsel %vm613, %v612, 0.0
        %618 = vrot.lane.b32.xlu0 %v615, 127
        %v619 = vpop.permute.xlu0 %618
        %v621 = vadd.f32 %v614, %v619
        %623 = vrot.lane.b32.xlu0 %v616, 126
        %v624 = vpop.permute.xlu0 %623
        %v626 = vadd.f32 %v621, %v624
        %v627 = vld [vmem:[%s8] sm:$0xff]
        %629 = vset.pattern.permute.xlu0 0
        %630 = vperm.xlu0 %629, %v627
        %v631 = vpop.permute.xlu0 %630
        %v633 = vadd.f32 %v626, %v631
        %v634 = vmax.f32 %v633, 0.0
        %v635 = vld [vmem:[%s414] sm:$0xff]
        %v636 = vadd.f32 %v634, %v635
        %v637 = vld [vmem:[%s4] sm:$0xff]
        %v638 = vld [vmem:[%s4 + $0x8] sm:$0xff]
        %v640 = vsel %vm507, %v636, 0
        %642 = vmatprep.subr.mxu0 0.0
        %643 = vmatpush1.msra.mxu0 0.0
        %644 = vmatprep.subr.mxu0 0.0
        %645 = vmatpush1.msra.mxu0 0.0
        %646 = vmatprep.subr.mxu0 0.0
        %647 = vmatpush1.msra.mxu0 0.0
        %648 = vmatprep.subr.mxu0 0.0
        %649 = vmatpush1.msra.mxu0 0.0
        %650 = vmatprep.subr.mxu0 0.0
        %651 = vmatpush1.msra.mxu0 0.0
        %652 = vmatprep.subr.mxu0 0.0
        %653 = vmatpush1.msra.mxu0 0.0
        %654 = vmatprep.subr.mxu0 0.0
        %655 = vmatpush1.msra.mxu0 0.0
        %656 = vmatprep.subr.mxu0 0.0
        %657 = vmatpush1.msra.mxu0 0.0
        %658 = vmatprep.subr.mxu0 0.0
        %659 = vmatpush1.msra.mxu0 0.0
        %660 = vmatprep.subr.mxu0 0.0
        %661 = vmatpush1.msra.mxu0 0.0
        %662 = vmatprep.subr.mxu0 0.0
        %663 = vmatpush1.msra.mxu0 0.0
        %664 = vmatprep.subr.mxu0 0.0
        %665 = vmatpush1.msra.mxu0 0.0
        %666 = vmatprep.subr.mxu0 0.0
        %667 = vmatpush1.msra.mxu0 0.0
        %668 = vmatprep.subr.mxu0 0.0
        %669 = vmatpush1.msra.mxu0 0.0
        %670 = vmatprep.subr.mxu0 0.0
        %671 = vmatpush1.msra.mxu0 %v638
        %672 = vmatprep.subr.mxu0 0.0
        %673 = vmatpush1.msra.mxu0 %v637
        %674 = vmatprep.subr.mxu0 0.0
        %675 = vmatpush2.msra.mxu0 0.0
        %676 = vmatprep.subr.mxu0 0.0
        %677 = vmatpush2.msra.mxu0 0.0
        %678 = vmatprep.subr.mxu0 0.0
        %679 = vmatpush2.msra.mxu0 0.0
        %680 = vmatprep.subr.mxu0 0.0
        %681 = vmatpush2.msra.mxu0 0.0
        %682 = vmatprep.subr.mxu0 0.0
        %683 = vmatpush2.msra.mxu0 0.0
        %684 = vmatprep.subr.mxu0 0.0
        %685 = vmatpush2.msra.mxu0 0.0
        %686 = vmatprep.subr.mxu0 0.0
        %687 = vmatpush2.msra.mxu0 0.0
        %688 = vmatprep.subr.mxu0 0.0
        %689 = vmatpush2.msra.mxu0 0.0
        %690 = vmatprep.subr.mxu0 0.0
        %691 = vmatpush2.msra.mxu0 0.0
        %692 = vmatprep.subr.mxu0 0.0
        %693 = vmatpush2.msra.mxu0 0.0
        %694 = vmatprep.subr.mxu0 0.0
        %695 = vmatpush2.msra.mxu0 0.0
        %696 = vmatprep.subr.mxu0 0.0
        %697 = vmatpush2.msra.mxu0 0.0
        %698 = vmatprep.subr.mxu0 0.0
        %699 = vmatpush2.msra.mxu0 0.0
        %700 = vmatprep.subr.mxu0 0.0
        %701 = vmatpush2.msra.mxu0 0.0
        %702 = vmatprep.subr.mxu0 0.0
        %703 = vmatpush2.msra.mxu0 0.0
        %704 = vmatprep.subr.mxu0 0.0
        %705 = vmatpush2.msra.mxu0 0.0
        %706 = vmatprep.mubr.f32.mxu0 0.0
        %707 = vmatmul.mubr.f32.gmra.mxu0 %v640
        %v708 = vpop.f32.mrf.mxu0
        %v709 = vadd.f32 0.0, %v708
        %v710 = vpop.f32.mrf.mxu0
        %711 = vdwg.mxu0
        %v712 = vld [vmem:[%s6] sm:$0xff]
        %v713 = vld [vmem:[%s6 + $0x8] sm:$0xf]
        %v715 = vsel %vm422, %v712, 0
        %v718 = vsel %vm422, %v713, 0
        %720 = vmatprep.subr.mxu0 0.0
        %721 = vmatpush1.msra.mxu0 0.0
        %722 = vmatprep.subr.mxu0 0.0
        %723 = vmatpush1.msra.mxu0 0.0
        %724 = vmatprep.subr.mxu0 0.0
        %725 = vmatpush1.msra.mxu0 0.0
        %726 = vmatprep.subr.mxu0 0.0
        %727 = vmatpush1.msra.mxu0 0.0
        %728 = vmatprep.subr.mxu0 0.0
        %729 = vmatpush1.msra.mxu0 0.0
        %730 = vmatprep.subr.mxu0 0.0
        %731 = vmatpush1.msra.mxu0 0.0
        %732 = vmatprep.subr.mxu0 0.0
        %733 = vmatpush1.msra.mxu0 0.0
        %734 = vmatprep.subr.mxu0 0.0
        %735 = vmatpush1.msra.mxu0 0.0
        %736 = vmatprep.subr.mxu0 0.0
        %737 = vmatpush1.msra.mxu0 0.0
        %738 = vmatprep.subr.mxu0 0.0
        %739 = vmatpush1.msra.mxu0 0.0
        %740 = vmatprep.subr.mxu0 0.0
        %741 = vmatpush1.msra.mxu0 0.0
        %742 = vmatprep.subr.mxu0 0.0
        %743 = vmatpush1.msra.mxu0 0.0
        %744 = vmatprep.subr.mxu0 0.0
        %745 = vmatpush1.msra.mxu0 0.0
        %746 = vmatprep.subr.mxu0 0.0
        %747 = vmatpush1.msra.mxu0 0.0
        %748 = vmatprep.subr.mxu0 0.0
        %749 = vmatpush1.msra.mxu0 0.0
        %750 = vmatprep.subr.mxu0 0.0
        %751 = vmatpush1.msra.mxu0 %v709
        %752 = vmatprep.subr.mxu0 0.0
        %753 = vmatpush2.msra.mxu0 0.0
        %754 = vmatprep.subr.mxu0 0.0
        %755 = vmatpush2.msra.mxu0 0.0
        %756 = vmatprep.subr.mxu0 0.0
        %757 = vmatpush2.msra.mxu0 0.0
        %758 = vmatprep.subr.mxu0 0.0
        %759 = vmatpush2.msra.mxu0 0.0
        %760 = vmatprep.subr.mxu0 0.0
        %761 = vmatpush2.msra.mxu0 0.0
        %762 = vmatprep.subr.mxu0 0.0
        %763 = vmatpush2.msra.mxu0 0.0
        %764 = vmatprep.subr.mxu0 0.0
        %765 = vmatpush2.msra.mxu0 0.0
        %766 = vmatprep.subr.mxu0 0.0
        %767 = vmatpush2.msra.mxu0 0.0
        %768 = vmatprep.subr.mxu0 0.0
        %769 = vmatpush2.msra.mxu0 0.0
        %770 = vmatprep.subr.mxu0 0.0
        %771 = vmatpush2.msra.mxu0 0.0
        %772 = vmatprep.subr.mxu0 0.0
        %773 = vmatpush2.msra.mxu0 0.0
        %774 = vmatprep.subr.mxu0 0.0
        %775 = vmatpush2.msra.mxu0 0.0
        %776 = vmatprep.subr.mxu0 0.0
        %777 = vmatpush2.msra.mxu0 0.0
        %778 = vmatprep.subr.mxu0 0.0
        %779 = vmatpush2.msra.mxu0 0.0
        %780 = vmatprep.subr.mxu0 0.0
        %781 = vmatpush2.msra.mxu0 0.0
        %782 = vmatprep.subr.mxu0 0.0
        %783 = vmatpush2.msra.mxu0 0.0
        %784 = vmatprep.mubr.f32.mxu0 0.0
        %785 = vmatmul.mubr.f32.gmra.mxu0 %v715
        %v786 = vpop.f32.mrf.mxu0
        %v787 = vadd.f32 0.0, %v786
        %v788 = vpop.f32.mrf.mxu0
        %789 = vmatprep.mubr.f32.mxu0 0.0
        %790 = vmatmul.mubr.f32.gmra.mxu0 %v718
        %v791 = vpop.f32.mrf.mxu0
        %v792 = vadd.f32 0.0, %v791
        %v793 = vpop.f32.mrf.mxu0
        %794 = vdwg.mxu0
        %797 = vrot.lane.b32.xlu0 %v787, 1
        %v798 = vpop.permute.xlu0 %797
        %799 = vrot.lane.b32.xlu0 %v792, 1
        %v800 = vpop.permute.xlu0 %799
        %v803 = vsel %vm609, 0.0, %v798
        %v804 = vsel %vm609, 0.0, %v800
        %vm805 = vcmask 269312
        %v806 = vsel %vm805, %v803, 0.0
        %v807 = vsel %vm805, %v804, 0.0
        %v809 = vrot.slane %v806, 4
        %810 = vrot.lane.b32.xlu0 %v809, 127
        %v811 = vpop.permute.xlu0 %810
        %v813 = vadd.f32 %v806, %v811
        %815 = vrot.lane.b32.xlu0 %v807, 126
        %v816 = vpop.permute.xlu0 %815
        %v818 = vadd.f32 %v813, %v816
        %v819 = vld [vmem:[%s9] sm:$0xf]
        %821 = vset.pattern.permute.xlu0 0
        %822 = vperm.xlu0 %821, %v819
        %v823 = vpop.permute.xlu0 %822
        %v825 = vadd.f32 %v818, %v823
        %v826 = vmax.f32 %v825, 0.0
        %v827 = vld [vmem:[%s418] sm:$0xf]
        %v828 = vadd.f32 %v826, %v827
        %v829 = vld [vmem:[%s7] sm:$0xff]
        %v830 = vld [vmem:[%s7 + $0x8] sm:$0xff]
        %v831 = vld [vmem:[%s7 + $0x10] sm:$0xff]
        %vm832 = vcmask 31744
        %v834 = vsel %vm832, %v829, 0
        %v837 = vsel %vm832, %v830, 0
        %v840 = vsel %vm832, %v831, 0
        %vm842 = vcmask 1043456
        %v844 = vsel %vm842, %v828, 0
        %846 = vmatprep.subr.mxu0 0.0
        %847 = vmatpush1.msra.mxu0 0.0
        %848 = vmatprep.subr.mxu0 0.0
        %849 = vmatpush1.msra.mxu0 0.0
        %850 = vmatprep.subr.mxu0 0.0
        %851 = vmatpush1.msra.mxu0 0.0
        %852 = vmatprep.subr.mxu0 0.0
        %853 = vmatpush1.msra.mxu0 0.0
        %854 = vmatprep.subr.mxu0 0.0
        %855 = vmatpush1.msra.mxu0 0.0
        %856 = vmatprep.subr.mxu0 0.0
        %857 = vmatpush1.msra.mxu0 0.0
        %858 = vmatprep.subr.mxu0 0.0
        %859 = vmatpush1.msra.mxu0 0.0
        %860 = vmatprep.subr.mxu0 0.0
        %861 = vmatpush1.msra.mxu0 0.0
        %862 = vmatprep.subr.mxu0 0.0
        %863 = vmatpush1.msra.mxu0 0.0
        %864 = vmatprep.subr.mxu0 0.0
        %865 = vmatpush1.msra.mxu0 0.0
        %866 = vmatprep.subr.mxu0 0.0
        %867 = vmatpush1.msra.mxu0 0.0
        %868 = vmatprep.subr.mxu0 0.0
        %869 = vmatpush1.msra.mxu0 0.0
        %870 = vmatprep.subr.mxu0 0.0
        %871 = vmatpush1.msra.mxu0 0.0
        %872 = vmatprep.subr.mxu0 0.0
        %873 = vmatpush1.msra.mxu0 0.0
        %874 = vmatprep.subr.mxu0 0.0
        %875 = vmatpush1.msra.mxu0 0.0
        %876 = vmatprep.subr.mxu0 0.0
        %877 = vmatpush1.msra.mxu0 %v844
        %878 = vmatprep.subr.mxu0 0.0
        %879 = vmatpush2.msra.mxu0 0.0
        %880 = vmatprep.subr.mxu0 0.0
        %881 = vmatpush2.msra.mxu0 0.0
        %882 = vmatprep.subr.mxu0 0.0
        %883 = vmatpush2.msra.mxu0 0.0
        %884 = vmatprep.subr.mxu0 0.0
        %885 = vmatpush2.msra.mxu0 0.0
        %886 = vmatprep.subr.mxu0 0.0
        %887 = vmatpush2.msra.mxu0 0.0
        %888 = vmatprep.subr.mxu0 0.0
        %889 = vmatpush2.msra.mxu0 0.0
        %890 = vmatprep.subr.mxu0 0.0
        %891 = vmatpush2.msra.mxu0 0.0
        %892 = vmatprep.subr.mxu0 0.0
        %893 = vmatpush2.msra.mxu0 0.0
        %894 = vmatprep.subr.mxu0 0.0
        %895 = vmatpush2.msra.mxu0 0.0
        %896 = vmatprep.subr.mxu0 0.0
        %897 = vmatpush2.msra.mxu0 0.0
        %898 = vmatprep.subr.mxu0 0.0
        %899 = vmatpush2.msra.mxu0 0.0
        %900 = vmatprep.subr.mxu0 0.0
        %901 = vmatpush2.msra.mxu0 0.0
        %902 = vmatprep.subr.mxu0 0.0
        %903 = vmatpush2.msra.mxu0 0.0
        %904 = vmatprep.subr.mxu0 0.0
        %905 = vmatpush2.msra.mxu0 0.0
        %906 = vmatprep.subr.mxu0 0.0
        %907 = vmatpush2.msra.mxu0 0.0
        %908 = vmatprep.subr.mxu0 0.0
        %909 = vmatpush2.msra.mxu0 0.0
        %910 = vmatprep.mubr.f32.mxu0 0.0
        %911 = vmatmul.mubr.f32.gmra.mxu0 %v834
        %v912 = vpop.f32.mrf.mxu0
        %v913 = vadd.f32 0.0, %v912
        %v914 = vpop.f32.mrf.mxu0
        %915 = vmatprep.mubr.f32.mxu0 0.0
        %916 = vmatmul.mubr.f32.gmra.mxu0 %v837
        %v917 = vpop.f32.mrf.mxu0
        %v918 = vadd.f32 0.0, %v917
        %v919 = vpop.f32.mrf.mxu0
        %920 = vmatprep.mubr.f32.mxu0 0.0
        %921 = vmatmul.mubr.f32.gmra.mxu0 %v840
        %v922 = vpop.f32.mrf.mxu0
        %v923 = vadd.f32 0.0, %v922
        %v924 = vpop.f32.mrf.mxu0
        %925 = vdwg.mxu0
        %929 = vrot.lane.b32.xlu0 %v913, 1
        %v930 = vpop.permute.xlu0 %929
        %931 = vrot.lane.b32.xlu0 %v918, 1
        %v932 = vpop.permute.xlu0 %931
        %933 = vrot.lane.b32.xlu0 %v923, 1
        %v934 = vpop.permute.xlu0 %933
        %v938 = vsel %vm609, 0.0, %v930
        %v939 = vsel %vm609, 0.0, %v932
        %v940 = vsel %vm609, 0.0, %v934
        %v941 = vsel %vm805, %v938, 0.0
        %v942 = vsel %vm805, %v939, 0.0
        %v943 = vsel %vm805, %v940, 0.0
        %945 = vrot.lane.b32.xlu0 %v942, 127
        %v946 = vpop.permute.xlu0 %945
        %v948 = vadd.f32 %v941, %v946
        %950 = vrot.lane.b32.xlu0 %v943, 126
        %v951 = vpop.permute.xlu0 %950
        %v953 = vadd.f32 %v948, %v951
        %v954 = vld [vmem:[%s10] sm:$0xff]
        %956 = vset.pattern.permute.xlu0 0
        %957 = vperm.xlu0 %956, %v954
        %v958 = vpop.permute.xlu0 %957
        %v960 = vadd.f32 %v953, %v958
        %vm961 = vcmask 261120
        %962 = vst.msk [vmem:[%s405] sm:$0xff] %vm961, %v960
        %s963 = sand.u32 %s279, 1
        %s964 = scalar_lea.sflag [#allocation3], %s963
        %s965 = sand.u32 %s279, 1
        %s966 = smul.addr %s965, 8
        %s967 = scalar_lea.vmem [#allocation2], %s966
        // Predicated region
        $region65: #{tpu_custom_call.1} parent=63 // pred_check
          %p968 = pneg %p289
        $region66: #{tpu_custom_call.1} parent=63 // pred_check_branch
          %970 = sbr.rel (%p968) target = $region68
        $region67: #{tpu_custom_call.1} parent=63 // pred_region
          %s972 = ssub.s32 128, 128
          %973 = vsyncadd %s964, %s972
          %s974 = smul.addr %s25, 128
          %s975 = scalar_lea.hbm %s11, %s974
          %s977 = sshll.u32 %s967, 4
          %s978 = int_to_ptr.vmem [resolvable:$true] %s977
          %980 = dma.vmem_to_hbm [thread:$0]  %s978, 128, %s975, %s964
        $region68: #{tpu_custom_call.1} parent=63 // pred_fallthru
          _
      $region64: #{tpu_custom_call.1} parent=5 // pred_fallthru
        _
      %p981 = scmp.le.s32.totalorder 2, %s20
      // Predicated region
      $region69: #{tpu_custom_call.1} parent=5 // pred_check
        %p982 = pneg %p981
      $region70: #{tpu_custom_call.1} parent=5 // pred_check_branch
        %984 = sbr.rel (%p982) target = $region72
      $region71: #{tpu_custom_call.1} parent=5 // pred_region
        %s985 = ssub.s32 %s20, 2
        // Predicated region
        $region73: #{tpu_custom_call.1} parent=71 // pred_check
          %p986 = pneg %p295
        $region74: #{tpu_custom_call.1} parent=71 // pred_check_branch
          %988 = sbr.rel (%p986) target = $region76
        $region75: #{tpu_custom_call.1} parent=71 // pred_region
          %s989 = sand.u32 %s280, 1
          %s990 = scalar_lea.sflag [#allocation3], %s989
          %s991 = sand.u32 %s280, 1
          %s992 = smul.addr %s991, 8
          %s993 = scalar_lea.vmem [#allocation2], %s992
          %994 = dma.done %s990, 128
        $region76: #{tpu_custom_call.1} parent=71 // pred_fallthru
          _
      $region72: #{tpu_custom_call.1} parent=5 // pred_fallthru
        _
    $region6: #{tpu_custom_call.1} parent=1 // loop_footer
      %s24 = sadd.s32 1, %s20
    $region7: #{tpu_custom_call.1} parent=1 // loop_footer_branch
      %19 = sbr.rel target = $region3
    $region8: #{tpu_custom_call.1} parent=1 // loop_exit
      _
    %995 = vsyncpa [#allocation3], 1
    %s996 = scalar_lea.sflag [#allocation3], 1
    %997 = vsyncpa %s996, 1

</llo_original>
